<compile_context>
chip_gen: v6e
topology: v6e:2x2x1
jax: 0.10.0
libtpu: 0.0.40
codegen_flags: <defaults>
</compile_context>

<pallas_src>
import jax
import jax.numpy as jnp
from jax.experimental import pallas as pl
from jax.experimental.pallas import tpu as pltpu


# --------------------------------------------------------------------------
# Kernel
# --------------------------------------------------------------------------
def _gcn_kernel(text_ref, adj_ref, w_ref, b_ref, out_ref, hidden_ref):
    bt, n, fin = text_ref.shape
    fp = w_ref.shape[1]

    # hidden = text @ W : computed ONCE per batch tile (row-step 0) as a
    # single fused (Bt*Np, Fin) @ (Fin, Fp) MXU matmul, held in VMEM scratch.
    # The reshape is layout-free because Np is padded to a multiple of 8.
    @pl.when(pl.program_id(1) == 0)
    def _():
        t2d = text_ref[...].reshape(bt * n, fin)        # native dtype operand
        h = jnp.dot(t2d, w_ref[...], preferred_element_type=jnp.float32)
        hidden_ref[...] = h.reshape(bt, n, fp).astype(hidden_ref.dtype)

    adj = adj_ref[...]                                  # native dtype (f32/bf16)

    # Degree normalization: accumulate the row sum in f32 regardless of the
    # matmul operand dtype, then EUP reciprocal + one Newton-Raphson step
    # (restores exact-divide accuracy, cost is ~(Bt*tm) elements).
    denom = jnp.sum(adj.astype(jnp.float32), axis=2, keepdims=True) + 1.0
    inv = pl.reciprocal(denom, approx=True)             # EUP (free VLIW slot)
    inv = inv * (2.0 - denom * inv)                     # NR refinement

    # out = (adj @ hidden) / denom + bias   (MXU, f32 accumulation)
    out = jnp.einsum("brn,bnf->brf", adj, hidden_ref[...],
                     preferred_element_type=jnp.float32)     # (Bt, tm, Fp)
    out_ref[...] = (out * inv + b_ref[...]).astype(out_ref.dtype)


# --------------------------------------------------------------------------
# Tiling helpers
# --------------------------------------------------------------------------
def _round_up(x, m):
    return ((x + m - 1) // m) * m


def _vmem_capacity_bytes():
    """Per-core VMEM capacity (128 MiB v5e/v6e, 64 MiB v7x); safe fallback."""
    try:
        cap = getattr(pltpu.get_tpu_info(), "vmem_capacity_bytes", None)
        if cap:
            return int(cap)
    except Exception:
        pass
    return 64 * 1024 * 1024     # conservative: v7x per-core VMEM


def _choose_tiles(B, Np, Fin, Fp, in_elt, limit_bytes):
    """Pick (Bt, tm).  Prefer the largest adj row tile; grow Bt only until the
    hidden GEMM has ~256 rows of M, and keep the batch grid axis >= 2 steps
    when B >= 2 so both v7x TensorCores get work (harmless on 1-TC chips)."""
    max_bt = 1 if B < 2 else max(1, B // 2)
    bt_cands = [d for d in range(1, max_bt + 1) if B % d == 0]
    bt_target = next((d for d in bt_cands if d * Np >= 256), bt_cands[-1])

    def vmem_bytes(bt, tm):
        return (2 * bt * Np * Fin * in_elt              # text (double-buffered)
                + bt * Np * Fp * in_elt                 # hidden scratch (single)
                + 2 * Fin * Fp * in_elt + 2 * Fp * 4    # weight + bias
                + 2 * bt * tm * Np * in_elt             # adj row block
                + 2 * bt * tm * Fp * 4)                 # f32 output row block

    row_tiles = sorted({t for t in range(8, Np + 1, 8) if Np % t == 0} | {Np},
                       reverse=True)
    for bt in sorted([d for d in bt_cands if d <= bt_target], reverse=True):
        for tm in row_tiles:                            # biggest row tile first
            if vmem_bytes(bt, tm) <= limit_bytes:
                return bt, tm
    # Fallback (only for extreme Fin/Fp); the raised vmem_limit_bytes gives
    # the smallest tiling the best chance of fitting.
    return 1, row_tiles[-1]


# --------------------------------------------------------------------------
# Wrapper
# --------------------------------------------------------------------------
def graph_convolution(text, adj, weight, bias=None, *, use_bf16_matmul=False):
    """Pallas GraphConvolution forward.

    text:   (B, N, Fin)    adj: (B, N, N)    weight: (Fin, Fout)    bias: (Fout,)|None
    use_bf16_matmul: cast MXU operands (text/weight/adj/hidden) to bf16 while
        keeping f32 accumulation and f32 normalization/bias.  ~2-4x MXU rate
        and half the adj HBM traffic, gated behind this flag for accuracy.
    returns (B, N, Fout) float32
    """
    B, N, Fin = text.shape
    Fout = weight.shape[1]
    assert adj.shape == (B, N, N)

    cdt = jnp.bfloat16 if use_bf16_matmul else jnp.float32
    in_elt = 2 if use_bf16_matmul else 4

    # Lane-dense output columns: multiple of 128; 256 when overhead <= 25%
    # (v6e/v7x MXU is 2x256^2; 128 already saturates v5e's 4x128^2).
    fp128, fp256 = _round_up(Fout, 128), _round_up(Fout, 256)
    Fp = fp256 if (fp256 - Fout) * 4 <= Fout else fp128

    # Pad N: multiple of 8 (free reshape / sublane alignment); 128 when the
    # overhead is <= 25% (lane-dense adj loads, MXU-aligned contraction K).
    n8, n128 = _round_up(N, 8), _round_up(N, 128)
    Np = n128 if (n128 - N) * 4 <= N else n8

    text_p = text.astype(cdt)
    adj_p = adj.astype(cdt)
    if Np != N:
        text_p = jnp.pad(text_p, ((0, 0), (0, Np - N), (0, 0)))
        adj_p = jnp.pad(adj_p, ((0, 0), (0, Np - N), (0, Np - N)))

    w = weight.astype(cdt)
    bias_f32 = (jnp.zeros((Fout,), jnp.float32) if bias is None
                else bias.astype(jnp.float32))
    if Fp != Fout:
        w = jnp.pad(w, ((0, 0), (0, Fp - Fout)))
        bias_f32 = jnp.pad(bias_f32, ((0, Fp - Fout),))
    bias2d = bias_f32.reshape(1, Fp)

    # Generation-aware VMEM budget and scoped-VMEM limit.
    vmem_cap = _vmem_capacity_bytes()
    budget = int(vmem_cap * 0.70)           # ~90 MiB on 128 MiB, ~45 MiB on 64 MiB
    Bt, tm = _choose_tiles(B, Np, Fin, Fp, in_elt, budget)
    grid = (B // Bt, Np // tm)

    grid_spec = pltpu.PrefetchScalarGridSpec(
        num_scalar_prefetch=0,
        grid=grid,
        in_specs=[
            # text: full (Bt, Np, Fin) tile, constant across row steps
            # (block index unchanged -> no re-DMA); only read at row step 0.
            pl.BlockSpec((Bt, Np, Fin), lambda b, r: (b, 0, 0)),
            # adj: row-tiled (Bt, tm, Np) so VMEM stays bounded for large N.
            pl.BlockSpec((Bt, tm, Np), lambda b, r: (b, r, 0)),
            # weight / bias: constant blocks (fetched once).
            pl.BlockSpec((Fin, Fp), lambda b, r: (0, 0)),
            pl.BlockSpec((1, Fp), lambda b, r: (0, 0)),
        ],
        out_specs=pl.BlockSpec((Bt, tm, Fp), lambda b, r: (b, r, 0)),
        scratch_shapes=[pltpu.VMEM((Bt, Np, Fp), cdt)],   # hidden = text @ W
    )

    cost = pl.CostEstimate(
        flops=int(2 * B * Np * Fp * (Fin + Np)),
        transcendentals=int(B * Np),
        bytes_accessed=int((B * Np * Fin + B * Np * Np + Fin * Fp) * in_elt
                           + (B * Np * Fp + Fp) * 4),
    )

    out = pl.pallas_call(
        _gcn_kernel,
        out_shape=jax.ShapeDtypeStruct((B, Np, Fp), jnp.float32),
        grid_spec=grid_spec,
        compiler_params=pltpu.CompilerParams(
            # batch axis megacore-parallel; row axis sequential because the
            # hidden scratch computed at row-step 0 is reused by later steps.
            dimension_semantics=("parallel", "arbitrary"),
            vmem_limit_bytes=int(vmem_cap * 0.90),
        ),
        cost_estimate=cost,
    )(text_p, adj_p, w, bias2d)

    if Np != N or Fp != Fout:
        out = out[:, :N, :Fout]
    return out


# --------------------------------------------------------------------------
# Pure-JAX reference (mirrors the torch forward)
# --------------------------------------------------------------------------
def graph_convolution_ref(text, adj, weight, bias):
    hidden = jnp.matmul(text.astype(jnp.float32), weight.astype(jnp.float32))
    denom = jnp.sum(adj.astype(jnp.float32), axis=2, keepdims=True) + 1.0
    out = jnp.matmul(adj.astype(jnp.float32), hidden) / denom
    if bias is not None:
        out = out + bias.astype(jnp.float32)
    return out


if __name__ == "__main__":
    # Small shapes implied by the module: batch of sequences with hidden dims.
    B, N, Fin, Fout = 2, 8, 32, 32

    key = jax.random.PRNGKey(0)
    k_text, k_adj, k_w, k_b = jax.random.split(key, 4)

    text = jax.random.normal(k_text, (B, N, Fin), dtype=jnp.float32)
    # adjacency: nonnegative, like a (soft) graph adjacency matrix
    adj = jax.random.uniform(k_adj, (B, N, N), dtype=jnp.float32)

    # Deterministic parameter init (module's __init__ only defines shapes).
    weight = jax.random.normal(k_w, (Fin, Fout), dtype=jnp.float32) * 0.1
    bias = jax.random.normal(k_b, (Fout,), dtype=jnp.float32) * 0.1

    ref = graph_convolution_ref(text, adj, weight, bias)

    # Default f32 path: matches torch .float() semantics; NR-refined
    # reciprocal keeps it at exact-divide accuracy.
    out = jax.block_until_ready(graph_convolution(text, adj, weight, bias))
    assert out.shape == (B, N, Fout)
    assert jnp.allclose(out, ref, atol=1e-4, rtol=1e-4), "f32 path mismatch"

    # Optional bf16 MXU-operand path (f32 accumulation): looser tolerance.
    out_bf16 = jax.block_until_ready(
        graph_convolution(text, adj, weight, bias, use_bf16_matmul=True))
    assert out_bf16.shape == (B, N, Fout)
    assert jnp.allclose(out_bf16, ref, atol=5e-2, rtol=5e-2), "bf16 path mismatch"

    print("KERNEL_OK")
</pallas_src>

<mosaic_0001>
module attributes {stable_mosaic.version = 11 : i64} {
  func.func @_gcn_kernel(%arg0: i32, %arg1: i32, %arg2: memref<1x8x32xf32, #tpu.memory_space<vmem>>, %arg3: memref<1x8x8xf32, #tpu.memory_space<vmem>>, %arg4: memref<32x128xf32, #tpu.memory_space<vmem>>, %arg5: memref<1x128xf32, #tpu.memory_space<vmem>>, %arg6: memref<1x8x128xf32, #tpu.memory_space<vmem>>, %arg7: memref<1x8x128xf32, #tpu.memory_space<vmem>>) attributes {dimension_semantics = [#tpu.dimension_semantics<parallel>, #tpu.dimension_semantics<arbitrary>], iteration_bounds = array<i64: 2, 1>, scalar_prefetch = 0 : i64, scratch_operands = 1 : i64, tpu.core_type = #tpu.core_type<tc>, window_params = [{transform_indices = @transform_0, window_bounds = array<i64: 1, 8, 32>}, {transform_indices = @transform_1, window_bounds = array<i64: 1, 8, 8>}, {pipeline_mode = #tpu.pipeline_mode<synchronous>, transform_indices = @transform_2, window_bounds = array<i64: 32, 128>}, {pipeline_mode = #tpu.pipeline_mode<synchronous>, transform_indices = @transform_3, window_bounds = array<i64: 1, 128>}, {transform_indices = @transform_4, window_bounds = array<i64: 1, 8, 128>}]} {
    %c0_i32 = arith.constant 0 : i32
    %0 = arith.cmpi eq, %arg1, %c0_i32 : i32
    %1 = arith.extui %0 : i1 to i32
    %c0_i32_0 = arith.constant 0 : i32
    %2 = arith.cmpi ne, %1, %c0_i32_0 : i32
    scf.if %2 {
      %c0_14 = arith.constant 0 : index
      %c0_15 = arith.constant 0 : index
      %c0_16 = arith.constant 0 : index
      %22 = vector.load %arg2[%c0_14, %c0_15, %c0_16] : memref<1x8x32xf32, #tpu.memory_space<vmem>>, vector<1x8x32xf32>
      %23 = vector.shape_cast %22 : vector<1x8x32xf32> to vector<8x32xf32>
      %c0_17 = arith.constant 0 : index
      %c0_18 = arith.constant 0 : index
      %24 = vector.load %arg4[%c0_17, %c0_18] : memref<32x128xf32, #tpu.memory_space<vmem>>, vector<32x128xf32>
      %cst_19 = arith.constant dense<0.000000e+00> : vector<8x128xf32>
      %25 = tpu.matmul %23, %24, %cst_19 {dimension_numbers = #tpu.dot_dimension_numbers<[1], [0], [0], [1], [0, 0, 1, 1], [], []>} : vector<8x32xf32>, vector<32x128xf32>, vector<8x128xf32> -> vector<8x128xf32>
      %26 = vector.shape_cast %25 : vector<8x128xf32> to vector<1x8x128xf32>
      %c0_20 = arith.constant 0 : index
      %c0_21 = arith.constant 0 : index
      %c0_22 = arith.constant 0 : index
      %27 = vector.load %arg7[%c0_20, %c0_21, %c0_22] : memref<1x8x128xf32, #tpu.memory_space<vmem>>, vector<1x8x128xf32>
      tpu.vector_store %arg7[%c0_20, %c0_21, %c0_22], %26 {strides = array<i32>} : memref<1x8x128xf32, #tpu.memory_space<vmem>>, vector<1x8x128xf32>,
    } else {
    }
    %c0 = arith.constant 0 : index
    %c0_1 = arith.constant 0 : index
    %c0_2 = arith.constant 0 : index
    %3 = vector.load %arg3[%c0, %c0_1, %c0_2] : memref<1x8x8xf32, #tpu.memory_space<vmem>>, vector<1x8x8xf32>
    %cst = arith.constant dense<0.000000e+00> : vector<1x8xf32>
    %4 = vector.multi_reduction <add>, %3, %cst [2] : vector<1x8x8xf32> to vector<1x8xf32>
    %5 = vector.shape_cast %4 : vector<1x8xf32> to vector<1x8x1xf32>
    %cst_3 = arith.constant 1.000000e+00 : f32
    %6 = vector.broadcast %cst_3 : f32 to vector<1x8x1xf32>
    %7 = arith.addf %5, %6 : vector<1x8x1xf32>
    %8 = tpu.reciprocal %7 {approx = true} : vector<1x8x1xf32> -> vector<1x8x1xf32>
    %9 = arith.mulf %7, %8 : vector<1x8x1xf32>
    %cst_4 = arith.constant 2.000000e+00 : f32
    %10 = vector.broadcast %cst_4 : f32 to vector<1x8x1xf32>
    %11 = arith.subf %10, %9 : vector<1x8x1xf32>
    %12 = arith.mulf %8, %11 : vector<1x8x1xf32>
    %c0_5 = arith.constant 0 : index
    %c0_6 = arith.constant 0 : index
    %c0_7 = arith.constant 0 : index
    %13 = vector.load %arg7[%c0_5, %c0_6, %c0_7] : memref<1x8x128xf32, #tpu.memory_space<vmem>>, vector<1x8x128xf32>
    "tpu.trace_start"() <{level = 10 : i32, message = "brn,bnf->brf"}> : () -> ()
    %cst_8 = arith.constant dense<0.000000e+00> : vector<1x8x128xf32>
    %14 = tpu.matmul %3, %13, %cst_8 {dimension_numbers = #tpu.dot_dimension_numbers<[2], [1], [1], [2], [0, 0, 0, 1, 1, 2], [0], [0]>} : vector<1x8x8xf32>, vector<1x8x128xf32>, vector<1x8x128xf32> -> vector<1x8x128xf32>
    "tpu.trace_stop"() : () -> ()
    %15 = vector.broadcast %12 : vector<1x8x1xf32> to vector<1x8x128xf32>
    %16 = arith.mulf %14, %15 : vector<1x8x128xf32>
    %c0_9 = arith.constant 0 : index
    %c0_10 = arith.constant 0 : index
    %17 = vector.load %arg5[%c0_9, %c0_10] : memref<1x128xf32, #tpu.memory_space<vmem>>, vector<1x128xf32>
    %18 = vector.shape_cast %17 : vector<1x128xf32> to vector<1x1x128xf32>
    %19 = vector.broadcast %18 : vector<1x1x128xf32> to vector<1x8x128xf32>
    %20 = arith.addf %16, %19 : vector<1x8x128xf32>
    %c0_11 = arith.constant 0 : index
    %c0_12 = arith.constant 0 : index
    %c0_13 = arith.constant 0 : index
    %21 = vector.load %arg6[%c0_11, %c0_12, %c0_13] : memref<1x8x128xf32, #tpu.memory_space<vmem>>, vector<1x8x128xf32>
    tpu.vector_store %arg6[%c0_11, %c0_12, %c0_13], %20 {strides = array<i32>} : memref<1x8x128xf32, #tpu.memory_space<vmem>>, vector<1x8x128xf32>,
    return
  }
  func.func @transform_0(%arg0: i32, %arg1: i32) -> (i32, i32, i32) {
    %c0_i32 = arith.constant 0 : i32
    %c0_i32_0 = arith.constant 0 : i32
    %c0_i32_1 = arith.constant 0 : i32
    return %arg0, %c0_i32, %c0_i32_0 : i32, i32, i32
  }
  func.func @transform_1(%arg0: i32, %arg1: i32) -> (i32, i32, i32) {
    %c0_i32 = arith.constant 0 : i32
    %c0_i32_0 = arith.constant 0 : i32
    return %arg0, %arg1, %c0_i32 : i32, i32, i32
  }
  func.func @transform_2(%arg0: i32, %arg1: i32) -> (i32, i32) {
    %c0_i32 = arith.constant 0 : i32
    %c0_i32_0 = arith.constant 0 : i32
    %c0_i32_1 = arith.constant 0 : i32
    return %c0_i32, %c0_i32_0 : i32, i32
  }
  func.func @transform_3(%arg0: i32, %arg1: i32) -> (i32, i32) {
    %c0_i32 = arith.constant 0 : i32
    %c0_i32_0 = arith.constant 0 : i32
    %c0_i32_1 = arith.constant 0 : i32
    return %c0_i32, %c0_i32_0 : i32, i32
  }
  func.func @transform_4(%arg0: i32, %arg1: i32) -> (i32, i32, i32) {
    %c0_i32 = arith.constant 0 : i32
    %c0_i32_0 = arith.constant 0 : i32
    return %arg0, %arg1, %c0_i32 : i32, i32, i32
  }
}

</mosaic_0001>

<llo_original>
// kernel: tpu_custom_call.1
$region0: #{tpu_custom_call.1}
  #allocation0 [shape = 'u32[]', space=smem, size = 0x4, offset = 0x4, fixed_abs, tag = 'smem constant byte address 0x4 - core index']
  #allocation1 [shape = 'u32[144,128]{1,0:T(1,128)}', space=vmem, size = 0x12000, scoped, tag = 'internal scratch']
  #allocation2 [shape = 'f32[1,8,128]{2,1,0:T(8,128)}', space=vmem, size = 0x1000, scoped, tag = 'scratch operand']
  %s0 = inlined_call_operand.hbm [shape: f32[2,8,32], index: 0, kind: input, shape index: {}]
  %s1 = inlined_call_operand.hbm [shape: f32[2,8,8], index: 1, kind: input, shape index: {}]
  %s2 = inlined_call_operand.hbm [shape: f32[32,128], index: 2, kind: input, shape index: {}]
  %s3 = inlined_call_operand.vmem [shape: f32[1,128], index: 3, kind: input, shape index: {}]
  %s4 = inlined_call_operand.hbm [shape: f32[2,8,128], index: 4, kind: output, shape index: {}]
  %s5 = sld [smem:[#allocation0]]
  $region65: #{tpu_custom_call.1} parent=0
    _
  %s7 = ssub.s32 1, %s5
  %s8 = scalar_select 0, %s7, %s5
  $region1: #{tpu_custom_call.1} parent=0
    #allocation3 [shape = 'u8[8192]{0}', space=vmem, size = 0x2000, scoped, tag = 'input window, operand 0']
    #allocation4 [shape = 's32[2]{0}', space=sflag, size = 0x8, scoped, tag = 'scoped memory for tpu_custom_call.1']
    #allocation5 [shape = 's32[2]{0}', space=sflag, size = 0x8, scoped, tag = 'scoped memory for tpu_custom_call.1']
    #allocation6 [shape = 'u8[8192]{0}', space=vmem, size = 0x2000, scoped, tag = 'input window, operand 1']
    #allocation7 [shape = 's32[2]{0}', space=sflag, size = 0x8, scoped, tag = 'scoped memory for tpu_custom_call.1']
    #allocation8 [shape = 'u8[16384]{0}', space=vmem, size = 0x4000, scoped, tag = 'input window, operand 2, single buffered']
    #allocation9 [shape = 'u8[8192]{0}', space=vmem, size = 0x2000, scoped, tag = 'output window, operand 0']
    %9 = vsyncpa [#allocation4], 0
    %s10 = scalar_lea.sflag [#allocation4], 1
    %11 = vsyncpa %s10, 0
    %12 = vsyncpa [#allocation7], 0
    %s13 = scalar_lea.sflag [#allocation7], 1
    %14 = vsyncpa %s13, 0
    %15 = vsyncpa [#allocation5], 0
    %s16 = scalar_lea.sflag [#allocation5], 1
    %17 = vsyncpa %s16, 0
    loop: start=0, step=1, limit=4
    $region2: #{tpu_custom_call.1} parent=1 // loop_pre_header
      _
    $region3: #{tpu_custom_call.1} parent=1 // loop_header
      %s19 = sphi 0, %s23
      %p20 = scmp.ge.s32.totalorder %s19, 4
      %s26 = sphi 0, %s38
      %s27 = sphi 0, %s34
      %s28 = sphi 0, %s26
      %s29 = sphi 0, %s27
      %s30 = sphi 0, %s28
      %s31 = sphi 0, %s29
      %s41 = sphi 0, %s43
      %s44 = sphi 0, %s41
      %s45 = sphi 0, %s44
      %s61 = sphi 0, %s45
      %s69 = sphi 0, %s71
      %s72 = sphi 0, %s69
      %s73 = sphi 0, %s72
      %s89 = sphi 0, %s73
      %s93 = sphi 0, %s93
      %s95 = sphi 0, %s93
      %s96 = sphi 0, %s95
      %s110 = sphi 0, %s96
      %s114 = sphi 0, %s114
      %s116 = sphi 0, %s114
      %s117 = sphi 0, %s116
      %s131 = sphi 0, %s117
      %s139 = sphi 0, %s141
      %s142 = sphi 0, %s139
      %s143 = sphi 0, %s142
      %s159 = sphi 0, %s143
    $region4: #{tpu_custom_call.1} parent=1 // loop_header_branch
      %22 = sbr.rel (%p20) target = $region8
    $region5: #{tpu_custom_call.1} parent=1 // loop_body
      %s24 = ssub.s32 %s19, 1
      %s25 = ssub.s32 %s19, 2
      %s32 = sadd.s32 1, %s27
      %p33 = scmp.ge.s32.totalorder %s32, 1
      %s34 = scalar_select %p33, 0, %s32
      %s35 = sadd.s32 1, %s26
      %s36 = scalar_select %p33, %s35, %s26
      %p37 = scmp.ge.s32.totalorder %s36, 2
      %s38 = scalar_select %p37, 0, %s36
      %s39 = ssub.s32 %s26, %s38
      %p40 = scmp.eq.s32.totalorder %s39, 0
      %s42 = sadd.s32 %s41, 1
      %s43 = scalar_select %p40, %s41, %s42
      %p46 = pneg %p40
      %p47 = scmp.eq.s32.totalorder %s19, 1
      %p48 = por %p46, %p47
      %p49 = scmp.ne.s32.totalorder %s41, %s44
      %p50 = scmp.eq.s32.totalorder %s19, 0
      %p51 = por %p49, %p50
      %p52 = scmp.ne.s32.totalorder %s41, %s44
      %p53 = scmp.eq.s32.totalorder %s24, 1
      %p54 = por %p52, %p53
      %p55 = scmp.ne.s32.totalorder %s44, %s45
      %p56 = scmp.eq.s32.totalorder %s24, 0
      %p57 = por %p55, %p56
      %p58 = scmp.ne.s32.totalorder %s44, %s45
      %p59 = scmp.eq.s32.totalorder %s25, 1
      %p60 = por %p58, %p59
      %p62 = scmp.ne.s32.totalorder %s45, %s61
      %p63 = scmp.eq.s32.totalorder %s25, 0
      %p64 = por %p62, %p63
      %s65 = ssub.s32 %s26, %s38
      %s66 = ssub.s32 %s27, %s34
      %s67 = sor.u32 %s65, %s66
      %p68 = scmp.eq.s32.totalorder %s67, 0
      %s70 = sadd.s32 %s69, 1
      %s71 = scalar_select %p68, %s69, %s70
      %p74 = pneg %p68
      %p75 = scmp.eq.s32.totalorder %s19, 1
      %p76 = por %p74, %p75
      %p77 = scmp.ne.s32.totalorder %s69, %s72
      %p78 = scmp.eq.s32.totalorder %s19, 0
      %p79 = por %p77, %p78
      %p80 = scmp.ne.s32.totalorder %s69, %s72
      %p81 = scmp.eq.s32.totalorder %s24, 1
      %p82 = por %p80, %p81
      %p83 = scmp.ne.s32.totalorder %s72, %s73
      %p84 = scmp.eq.s32.totalorder %s24, 0
      %p85 = por %p83, %p84
      %p86 = scmp.ne.s32.totalorder %s72, %s73
      %p87 = scmp.eq.s32.totalorder %s25, 1
      %p88 = por %p86, %p87
      %p90 = scmp.ne.s32.totalorder %s73, %s89
      %p91 = scmp.eq.s32.totalorder %s25, 0
      %p92 = por %p90, %p91
      %s94 = sadd.s32 %s93, 1
      %p97 = scmp.eq.s32.totalorder %s19, 1
      %p98 = scmp.ne.s32.totalorder %s93, %s95
      %p99 = scmp.eq.s32.totalorder %s19, 0
      %p100 = por %p98, %p99
      %p101 = scmp.ne.s32.totalorder %s93, %s95
      %p102 = scmp.eq.s32.totalorder %s24, 1
      %p103 = por %p101, %p102
      %p104 = scmp.ne.s32.totalorder %s95, %s96
      %p105 = scmp.eq.s32.totalorder %s24, 0
      %p106 = por %p104, %p105
      %p107 = scmp.ne.s32.totalorder %s95, %s96
      %p108 = scmp.eq.s32.totalorder %s25, 1
      %p109 = por %p107, %p108
      %p111 = scmp.ne.s32.totalorder %s96, %s110
      %p112 = scmp.eq.s32.totalorder %s25, 0
      %p113 = por %p111, %p112
      %s115 = sadd.s32 %s114, 1
      %p118 = scmp.eq.s32.totalorder %s19, 1
      %p119 = scmp.ne.s32.totalorder %s114, %s116
      %p120 = scmp.eq.s32.totalorder %s19, 0
      %p121 = por %p119, %p120
      %p122 = scmp.ne.s32.totalorder %s114, %s116
      %p123 = scmp.eq.s32.totalorder %s24, 1
      %p124 = por %p122, %p123
      %p125 = scmp.ne.s32.totalorder %s116, %s117
      %p126 = scmp.eq.s32.totalorder %s24, 0
      %p127 = por %p125, %p126
      %p128 = scmp.ne.s32.totalorder %s116, %s117
      %p129 = scmp.eq.s32.totalorder %s25, 1
      %p130 = por %p128, %p129
      %p132 = scmp.ne.s32.totalorder %s117, %s131
      %p133 = scmp.eq.s32.totalorder %s25, 0
      %p134 = por %p132, %p133
      %s135 = ssub.s32 %s26, %s38
      %s136 = ssub.s32 %s27, %s34
      %s137 = sor.u32 %s135, %s136
      %p138 = scmp.eq.s32.totalorder %s137, 0
      %s140 = sadd.s32 %s139, 1
      %s141 = scalar_select %p138, %s139, %s140
      %p144 = pneg %p138
      %p145 = scmp.eq.s32.totalorder %s19, 1
      %p146 = por %p144, %p145
      %p147 = scmp.ne.s32.totalorder %s139, %s142
      %p148 = scmp.eq.s32.totalorder %s19, 0
      %p149 = por %p147, %p148
      %p150 = scmp.ne.s32.totalorder %s139, %s142
      %p151 = scmp.eq.s32.totalorder %s24, 1
      %p152 = por %p150, %p151
      %p153 = scmp.ne.s32.totalorder %s142, %s143
      %p154 = scmp.eq.s32.totalorder %s24, 0
      %p155 = por %p153, %p154
      %p156 = scmp.ne.s32.totalorder %s142, %s143
      %p157 = scmp.eq.s32.totalorder %s25, 1
      %p158 = por %p156, %p157
      %p160 = scmp.ne.s32.totalorder %s143, %s159
      %p161 = scmp.eq.s32.totalorder %s25, 0
      %p162 = por %p160, %p161
      %p163 = scmp.le.s32.totalorder 1, %s19
      %p164 = scmp.lt.s32.totalorder %s19, 3
      %p165 = pnand %p163, %p164
      %p166 = pneg %p165
      // Predicated region
      $region9: #{tpu_custom_call.1} parent=5 // pred_check
        _
      $region10: #{tpu_custom_call.1} parent=5 // pred_check_branch
        %168 = sbr.rel (%p165) target = $region12
      $region11: #{tpu_custom_call.1} parent=5 // pred_region
        %s169 = ssub.s32 %s19, 1
        // Predicated region
        $region13: #{tpu_custom_call.1} parent=11 // pred_check
          %p170 = pneg %p106
        $region14: #{tpu_custom_call.1} parent=11 // pred_check_branch
          %172 = sbr.rel (%p170) target = $region16
        $region15: #{tpu_custom_call.1} parent=11 // pred_region
          %s174 = ssub.s32 512, 512
          %175 = vsyncadd [#allocation7], %s174
          %s176 = sshll.u32 [#allocation8], 4
          %s177 = int_to_ptr.vmem [resolvable:$true] %s176
          %182 = dma.hbm_to_vmem [thread:$0]  %s2, 512, %s177, [#allocation7], 128, 128, 8
        $region16: #{tpu_custom_call.1} parent=11 // pred_fallthru
          _
        // Predicated region
        $region17: #{tpu_custom_call.1} parent=11 // pred_check
          %p183 = pneg %p127
        $region18: #{tpu_custom_call.1} parent=11 // pred_check_branch
          %185 = sbr.rel (%p183) target = $region20
        $region19: #{tpu_custom_call.1} parent=11 // pred_region
          _
        $region20: #{tpu_custom_call.1} parent=11 // pred_fallthru
          _
      $region12: #{tpu_custom_call.1} parent=5 // pred_fallthru
        _
      %p186 = scmp.lt.s32.totalorder %s19, 2
      // Predicated region
      $region21: #{tpu_custom_call.1} parent=5 // pred_check
        %p187 = pneg %p186
      $region22: #{tpu_custom_call.1} parent=5 // pred_check_branch
        %189 = sbr.rel (%p187) target = $region24
      $region23: #{tpu_custom_call.1} parent=5 // pred_region
        // Predicated region
        $region25: #{tpu_custom_call.1} parent=23 // pred_check
          %p190 = pneg %p51
        $region26: #{tpu_custom_call.1} parent=23 // pred_check_branch
          %192 = sbr.rel (%p190) target = $region28
        $region27: #{tpu_custom_call.1} parent=23 // pred_region
          %s193 = sand.u32 %s41, 1
          %s194 = scalar_lea.sflag [#allocation4], %s193
          %s195 = sand.u32 %s41, 1
          %s196 = smul.addr %s195, 8
          %s197 = scalar_lea.vmem [#allocation3], %s196
          %s199 = ssub.s32 128, 128
          %200 = vsyncadd %s194, %s199
          %s201 = smul.addr %s26, 128
          %s202 = scalar_lea.hbm %s0, %s201
          %s204 = sshll.u32 %s197, 4
          %s205 = int_to_ptr.vmem [resolvable:$true] %s204
          %207 = dma.hbm_to_vmem [thread:$0]  %s202, 128, %s205, %s194
        $region28: #{tpu_custom_call.1} parent=23 // pred_fallthru
          _
        // Predicated region
        $region29: #{tpu_custom_call.1} parent=23 // pred_check
          %p208 = pneg %p79
        $region30: #{tpu_custom_call.1} parent=23 // pred_check_branch
          %210 = sbr.rel (%p208) target = $region32
        $region31: #{tpu_custom_call.1} parent=23 // pred_region
          %s211 = sand.u32 %s19, 1
          %s212 = scalar_lea.sflag [#allocation7], %s211
          %s213 = sand.u32 %s69, 1
          %s214 = smul.addr %s213, 8
          %s215 = scalar_lea.vmem [#allocation6], %s214
          %s217 = ssub.s32 128, 128
          %218 = vsyncadd %s212, %s217
          %s219 = sadd.s32 %s27, %s26
          %s220 = smul.addr %s219, 128
          %s221 = scalar_lea.hbm %s1, %s220
          %s223 = sshll.u32 %s215, 4
          %s224 = int_to_ptr.vmem [resolvable:$true] %s223
          %226 = dma.hbm_to_vmem [thread:$0]  %s221, 128, %s224, %s212
        $region32: #{tpu_custom_call.1} parent=23 // pred_fallthru
          _
      $region24: #{tpu_custom_call.1} parent=5 // pred_fallthru
        _
      %p227 = scmp.le.s32.totalorder 1, %s19
      %p228 = scmp.lt.s32.totalorder %s19, 3
      %p229 = pnand %p227, %p228
      %p230 = pneg %p229
      // Predicated region
      $region33: #{tpu_custom_call.1} parent=5 // pred_check
        _
      $region34: #{tpu_custom_call.1} parent=5 // pred_check_branch
        %232 = sbr.rel (%p229) target = $region36
      $region35: #{tpu_custom_call.1} parent=5 // pred_region
        %s233 = ssub.s32 %s19, 1
        %s234 = sand.u32 %s44, 1
        %s235 = scalar_lea.sflag [#allocation4], %s234
        %s236 = sand.u32 %s44, 1
        %s237 = smul.addr %s236, 8
        %s238 = scalar_lea.vmem [#allocation3], %s237
        // Predicated region
        $region37: #{tpu_custom_call.1} parent=35 // pred_check
          %p239 = pneg %p57
        $region38: #{tpu_custom_call.1} parent=35 // pred_check_branch
          %241 = sbr.rel (%p239) target = $region40
        $region39: #{tpu_custom_call.1} parent=35 // pred_region
          %242 = dma.done %s235, 128
        $region40: #{tpu_custom_call.1} parent=35 // pred_fallthru
          _
        %s243 = sand.u32 %s24, 1
        %s244 = scalar_lea.sflag [#allocation7], %s243
        %s245 = sand.u32 %s72, 1
        %s246 = smul.addr %s245, 8
        %s247 = scalar_lea.vmem [#allocation6], %s246
        // Predicated region
        $region41: #{tpu_custom_call.1} parent=35 // pred_check
          %p248 = pneg %p85
        $region42: #{tpu_custom_call.1} parent=35 // pred_check_branch
          %250 = sbr.rel (%p248) target = $region44
        $region43: #{tpu_custom_call.1} parent=35 // pred_region
          %251 = dma.done %s244, 128
        $region44: #{tpu_custom_call.1} parent=35 // pred_fallthru
          _
        // Predicated region
        $region45: #{tpu_custom_call.1} parent=35 // pred_check
          %p252 = pneg %p106
        $region46: #{tpu_custom_call.1} parent=35 // pred_check_branch
          %254 = sbr.rel (%p252) target = $region48
        $region47: #{tpu_custom_call.1} parent=35 // pred_region
          %255 = dma.done [#allocation7], 512
        $region48: #{tpu_custom_call.1} parent=35 // pred_fallthru
          _
        %s256 = sand.u32 %s44, 1
        %s257 = scalar_lea.sflag [#allocation4], %s256
        %s258 = sand.u32 %s44, 1
        %s259 = smul.addr %s258, 8
        %s260 = scalar_lea.vmem [#allocation3], %s259
        %p261 = pneg %p57
        %p262 = pneg %p54
        %s263 = sand.u32 %s24, 1
        %s264 = scalar_lea.sflag [#allocation7], %s263
        %s265 = sand.u32 %s72, 1
        %s266 = smul.addr %s265, 8
        %s267 = scalar_lea.vmem [#allocation6], %s266
        %p268 = pneg %p85
        %p269 = pneg %p82
        %p270 = pneg %p106
        %p271 = pneg %p103
        %p272 = pneg %p127
        %p273 = pneg %p124
        %p274 = pneg %p155
        %p275 = pneg %p152
        %s276 = sand.u32 %s142, 1
        %s277 = scalar_lea.sflag [#allocation5], %s276
        %s278 = sand.u32 %s142, 1
        %s279 = smul.addr %s278, 8
        %s280 = scalar_lea.vmem [#allocation9], %s279
        %p281 = scmp.eq.s32.totalorder %s29, 0
        // Predicated region
        $region49: #{tpu_custom_call.1} parent=35 // pred_check
          %p282 = pneg %p281
        $region50: #{tpu_custom_call.1} parent=35 // pred_check_branch
          %284 = sbr.rel (%p282) target = $region52
        $region51: #{tpu_custom_call.1} parent=35 // pred_region
          %v285 = vld [vmem:[%s238] sm:$0xff]
          %v286 = vld [vmem:[#allocation8] sm:$0xff]
          %v287 = vld [vmem:[#allocation8 + $0x8] sm:$0xff]
          %v288 = vld [vmem:[#allocation8 + $0x10] sm:$0xff]
          %v289 = vld [vmem:[#allocation8 + $0x18] sm:$0xff]
          %vm290 = vcmask 261120
          %v292 = vsel %vm290, %v285, 0
          %294 = vmatprep.subr.mxu0 0.0
          %295 = vmatpush1.msra.mxu0 0.0
          %296 = vmatprep.subr.mxu0 0.0
          %297 = vmatpush1.msra.mxu0 0.0
          %298 = vmatprep.subr.mxu0 0.0
          %299 = vmatpush1.msra.mxu0 0.0
          %300 = vmatprep.subr.mxu0 0.0
          %301 = vmatpush1.msra.mxu0 0.0
          %302 = vmatprep.subr.mxu0 0.0
          %303 = vmatpush1.msra.mxu0 0.0
          %304 = vmatprep.subr.mxu0 0.0
          %305 = vmatpush1.msra.mxu0 0.0
          %306 = vmatprep.subr.mxu0 0.0
          %307 = vmatpush1.msra.mxu0 0.0
          %308 = vmatprep.subr.mxu0 0.0
          %309 = vmatpush1.msra.mxu0 0.0
          %310 = vmatprep.subr.mxu0 0.0
          %311 = vmatpush1.msra.mxu0 0.0
          %312 = vmatprep.subr.mxu0 0.0
          %313 = vmatpush1.msra.mxu0 0.0
          %314 = vmatprep.subr.mxu0 0.0
          %315 = vmatpush1.msra.mxu0 0.0
          %316 = vmatprep.subr.mxu0 0.0
          %317 = vmatpush1.msra.mxu0 0.0
          %318 = vmatprep.subr.mxu0 0.0
          %319 = vmatpush1.msra.mxu0 %v289
          %320 = vmatprep.subr.mxu0 0.0
          %321 = vmatpush1.msra.mxu0 %v288
          %322 = vmatprep.subr.mxu0 0.0
          %323 = vmatpush1.msra.mxu0 %v287
          %324 = vmatprep.subr.mxu0 0.0
          %325 = vmatpush1.msra.mxu0 %v286
          %326 = vmatprep.subr.mxu0 0.0
          %327 = vmatpush2.msra.mxu0 0.0
          %328 = vmatprep.subr.mxu0 0.0
          %329 = vmatpush2.msra.mxu0 0.0
          %330 = vmatprep.subr.mxu0 0.0
          %331 = vmatpush2.msra.mxu0 0.0
          %332 = vmatprep.subr.mxu0 0.0
          %333 = vmatpush2.msra.mxu0 0.0
          %334 = vmatprep.subr.mxu0 0.0
          %335 = vmatpush2.msra.mxu0 0.0
          %336 = vmatprep.subr.mxu0 0.0
          %337 = vmatpush2.msra.mxu0 0.0
          %338 = vmatprep.subr.mxu0 0.0
          %339 = vmatpush2.msra.mxu0 0.0
          %340 = vmatprep.subr.mxu0 0.0
          %341 = vmatpush2.msra.mxu0 0.0
          %342 = vmatprep.subr.mxu0 0.0
          %343 = vmatpush2.msra.mxu0 0.0
          %344 = vmatprep.subr.mxu0 0.0
          %345 = vmatpush2.msra.mxu0 0.0
          %346 = vmatprep.subr.mxu0 0.0
          %347 = vmatpush2.msra.mxu0 0.0
          %348 = vmatprep.subr.mxu0 0.0
          %349 = vmatpush2.msra.mxu0 0.0
          %350 = vmatprep.subr.mxu0 0.0
          %351 = vmatpush2.msra.mxu0 0.0
          %352 = vmatprep.subr.mxu0 0.0
          %353 = vmatpush2.msra.mxu0 0.0
          %354 = vmatprep.subr.mxu0 0.0
          %355 = vmatpush2.msra.mxu0 0.0
          %356 = vmatprep.subr.mxu0 0.0
          %357 = vmatpush2.msra.mxu0 0.0
          %358 = vmatprep.mubr.f32.mxu0 0.0
          %359 = vmatmul.mubr.f32.gmra.mxu0 %v292
          %v360 = vpop.f32.mrf.mxu0
          %v361 = vadd.f32 0.0, %v360
          %v362 = vpop.f32.mrf.mxu0
          %363 = vdwg.mxu0
          %364 = vst [vmem:[#allocation2] sm:$0xff] %v361
        $region52: #{tpu_custom_call.1} parent=35 // pred_fallthru
          _
        %v365 = vld [vmem:[%s247] sm:$0xff]
        %vm366 = vcmask 64512
        %v367 = vsel %vm366, %v365, 0.0
        %368 = vadd.xlane.f32.xlu0 %v367
        %v369 = vpop.xlane.xlu0 %368
        %v370 = vadd.f32 %v369, 1.0
        %v371 = vrcp.pop %v370
        %v372 = vmul.f32 %v370, %v371
        %v373 = vsub.f32 2.0, %v372
        %v374 = vmul.f32 %v371, %v373
        %v375 = vld [vmem:[#allocation2] sm:$0xff]
        %v377 = vsel %vm366, %v365, 0
        %379 = vmatprep.subr.mxu0 0.0
        %380 = vmatpush1.msra.mxu0 0.0
        %381 = vmatprep.subr.mxu0 0.0
        %382 = vmatpush1.msra.mxu0 0.0
        %383 = vmatprep.subr.mxu0 0.0
        %384 = vmatpush1.msra.mxu0 0.0
        %385 = vmatprep.subr.mxu0 0.0
        %386 = vmatpush1.msra.mxu0 0.0
        %387 = vmatprep.subr.mxu0 0.0
        %388 = vmatpush1.msra.mxu0 0.0
        %389 = vmatprep.subr.mxu0 0.0
        %390 = vmatpush1.msra.mxu0 0.0
        %391 = vmatprep.subr.mxu0 0.0
        %392 = vmatpush1.msra.mxu0 0.0
        %393 = vmatprep.subr.mxu0 0.0
        %394 = vmatpush1.msra.mxu0 0.0
        %395 = vmatprep.subr.mxu0 0.0
        %396 = vmatpush1.msra.mxu0 0.0
        %397 = vmatprep.subr.mxu0 0.0
        %398 = vmatpush1.msra.mxu0 0.0
        %399 = vmatprep.subr.mxu0 0.0
        %400 = vmatpush1.msra.mxu0 0.0
        %401 = vmatprep.subr.mxu0 0.0
        %402 = vmatpush1.msra.mxu0 0.0
        %403 = vmatprep.subr.mxu0 0.0
        %404 = vmatpush1.msra.mxu0 0.0
        %405 = vmatprep.subr.mxu0 0.0
        %406 = vmatpush1.msra.mxu0 0.0
        %407 = vmatprep.subr.mxu0 0.0
        %408 = vmatpush1.msra.mxu0 0.0
        %409 = vmatprep.subr.mxu0 0.0
        %410 = vmatpush1.msra.mxu0 %v375
        %411 = vmatprep.subr.mxu0 0.0
        %412 = vmatpush2.msra.mxu0 0.0
        %413 = vmatprep.subr.mxu0 0.0
        %414 = vmatpush2.msra.mxu0 0.0
        %415 = vmatprep.subr.mxu0 0.0
        %416 = vmatpush2.msra.mxu0 0.0
        %417 = vmatprep.subr.mxu0 0.0
        %418 = vmatpush2.msra.mxu0 0.0
        %419 = vmatprep.subr.mxu0 0.0
        %420 = vmatpush2.msra.mxu0 0.0
        %421 = vmatprep.subr.mxu0 0.0
        %422 = vmatpush2.msra.mxu0 0.0
        %423 = vmatprep.subr.mxu0 0.0
        %424 = vmatpush2.msra.mxu0 0.0
        %425 = vmatprep.subr.mxu0 0.0
        %426 = vmatpush2.msra.mxu0 0.0
        %427 = vmatprep.subr.mxu0 0.0
        %428 = vmatpush2.msra.mxu0 0.0
        %429 = vmatprep.subr.mxu0 0.0
        %430 = vmatpush2.msra.mxu0 0.0
        %431 = vmatprep.subr.mxu0 0.0
        %432 = vmatpush2.msra.mxu0 0.0
        %433 = vmatprep.subr.mxu0 0.0
        %434 = vmatpush2.msra.mxu0 0.0
        %435 = vmatprep.subr.mxu0 0.0
        %436 = vmatpush2.msra.mxu0 0.0
        %437 = vmatprep.subr.mxu0 0.0
        %438 = vmatpush2.msra.mxu0 0.0
        %439 = vmatprep.subr.mxu0 0.0
        %440 = vmatpush2.msra.mxu0 0.0
        %441 = vmatprep.subr.mxu0 0.0
        %442 = vmatpush2.msra.mxu0 0.0
        %443 = vmatprep.mubr.f32.mxu0 0.0
        %444 = vmatmul.mubr.f32.gmra.mxu0 %v377
        %v445 = vpop.f32.mrf.mxu0
        %v446 = vadd.f32 0.0, %v445
        %v447 = vpop.f32.mrf.mxu0
        %448 = vdwg.mxu0
        %v449 = vmul.f32 %v446, %v374
        %v450 = vld [vmem:[%s3] sm:$0x1]
        %v452 = vlaneseq
        %v453 = vshrl.u32 %v452, 7
        %v454 = vsub.s32 0, %v453
        %v455 = vrot.slane %v450, %v454
        %v457 = vadd.f32 %v449, %v455
        %458 = vst [vmem:[%s280] sm:$0xff] %v457
        %s459 = sand.u32 %s142, 1
        %s460 = scalar_lea.sflag [#allocation5], %s459
        %s461 = sand.u32 %s142, 1
        %s462 = smul.addr %s461, 8
        %s463 = scalar_lea.vmem [#allocation9], %s462
        // Predicated region
        $region53: #{tpu_custom_call.1} parent=35 // pred_check
          %p464 = pneg %p152
        $region54: #{tpu_custom_call.1} parent=35 // pred_check_branch
          %466 = sbr.rel (%p464) target = $region56
        $region55: #{tpu_custom_call.1} parent=35 // pred_region
          %s468 = ssub.s32 128, 128
          %469 = vsyncadd %s460, %s468
          %s470 = sadd.s32 %s29, %s28
          %s471 = smul.addr %s470, 128
          %s472 = scalar_lea.hbm %s4, %s471
          %s474 = sshll.u32 %s463, 4
          %s475 = int_to_ptr.vmem [resolvable:$true] %s474
          %477 = dma.vmem_to_hbm [thread:$0]  %s475, 128, %s472, %s460
        $region56: #{tpu_custom_call.1} parent=35 // pred_fallthru
          _
      $region36: #{tpu_custom_call.1} parent=5 // pred_fallthru
        _
      %p478 = scmp.le.s32.totalorder 2, %s19
      // Predicated region
      $region57: #{tpu_custom_call.1} parent=5 // pred_check
        %p479 = pneg %p478
      $region58: #{tpu_custom_call.1} parent=5 // pred_check_branch
        %481 = sbr.rel (%p479) target = $region60
      $region59: #{tpu_custom_call.1} parent=5 // pred_region
        %s482 = ssub.s32 %s19, 2
        // Predicated region
        $region61: #{tpu_custom_call.1} parent=59 // pred_check
          %p483 = pneg %p158
        $region62: #{tpu_custom_call.1} parent=59 // pred_check_branch
          %485 = sbr.rel (%p483) target = $region64
        $region63: #{tpu_custom_call.1} parent=59 // pred_region
          %s486 = sand.u32 %s143, 1
          %s487 = scalar_lea.sflag [#allocation5], %s486
          %s488 = sand.u32 %s143, 1
          %s489 = smul.addr %s488, 8
          %s490 = scalar_lea.vmem [#allocation9], %s489
          %491 = dma.done %s487, 128
        $region64: #{tpu_custom_call.1} parent=59 // pred_fallthru
          _
      $region60: #{tpu_custom_call.1} parent=5 // pred_fallthru
        _
    $region6: #{tpu_custom_call.1} parent=1 // loop_footer
      %s23 = sadd.s32 1, %s19
    $region7: #{tpu_custom_call.1} parent=1 // loop_footer_branch
      %18 = sbr.rel target = $region3
    $region8: #{tpu_custom_call.1} parent=1 // loop_exit
      _
    %492 = vsyncpa [#allocation4], 1
    %s493 = scalar_lea.sflag [#allocation4], 1
    %494 = vsyncpa %s493, 1
    %495 = vsyncpa [#allocation7], 1
    %s496 = scalar_lea.sflag [#allocation7], 1
    %497 = vsyncpa %s496, 1
    %498 = vsyncpa [#allocation5], 1
    %s499 = scalar_lea.sflag [#allocation5], 1
    %500 = vsyncpa %s499, 1

</llo_original>
